<compile_context>
chip_gen: v6e
topology: v6e:2x2x1
jax: 0.10.0
libtpu: 0.0.40
codegen_flags: <defaults>
</compile_context>

<pallas_src>
import jax
import jax.numpy as jnp
from jax.experimental import pallas as pl
from jax.experimental.pallas import tpu as pltpu

V_TH = 1.0                      # IF-neuron firing threshold
LANE = 128                      # TPU lane width
ROW_TILE_CAP = 512              # measured knee of the HBM roofline for tiled copies
_VMEM_BUDGET_BYTES = 32 << 20   # working-set target, safe across v5e/v6e/v7x


def _round_up(x, m):
    return (x + m - 1) // m * m


# ---------------------------------------------------------------------------
# Kernel
# ---------------------------------------------------------------------------
def spiking_res_block_kernel(x_ref, w1_ref, t1_ref, w2_ref, t2_ref, out_ref):
    """Fused Linear1 -> IF spike -> Linear2 -> IF spike -> residual add."""
    x = x_ref[...]                                        # (row_tile, Cp) f32

    # Linear1 + bias -> spike, with the bias folded into a per-column threshold:
    #   (x @ w1 + b1 >= V_TH)  <=>  (x @ w1 >= V_TH - b1)
    # MXU runs in bf16; accumulation stays f32.
    h1 = jnp.dot(x.astype(jnp.bfloat16), w1_ref[...],
                 preferred_element_type=jnp.float32)
    s1 = (h1 >= t1_ref[...]).astype(jnp.bfloat16)         # 0/1 spikes exact in bf16

    # Linear2 + bias -> spike.
    h2 = jnp.dot(s1, w2_ref[...], preferred_element_type=jnp.float32)
    s2 = (h2 >= t2_ref[...]).astype(jnp.float32)

    # Residual add (downsample=None -> identity).
    out_ref[...] = s2 + x


# ---------------------------------------------------------------------------
# Parameter preparation (run ONCE, outside the hot path)
# ---------------------------------------------------------------------------
def prepare_params(params):
    """Pad/cast weights and fold biases into thresholds, once.

    Returns device arrays:
      w1, w2 : (Cp, Cp) bf16, zero-padded to Cp = round_up(C, 128)
      t1, t2 : (1, Cp) f32 per-column thresholds (V_TH - b); padded columns get
               threshold V_TH (bias 0) so they can never spike -> padding exact.
    """
    C = params["w1"].shape[0]
    Cp = _round_up(C, LANE)
    pc = Cp - C

    def pad_w(w):
        return jnp.pad(w.astype(jnp.float32), ((0, pc), (0, pc))).astype(jnp.bfloat16)

    def pad_t(b):
        b = jnp.asarray(b, jnp.float32).reshape(1, -1)
        return V_TH - jnp.pad(b, ((0, 0), (0, pc)))

    return {"w1": pad_w(params["w1"]), "t1": pad_t(params["b1"]),
            "w2": pad_w(params["w2"]), "t2": pad_t(params["b2"])}


def _choose_row_tile(n_rows, cp, weight_vmem_bytes):
    """Largest row tile that (a) keeps x/out double-buffered f32 blocks plus the
    resident weights inside the VMEM budget, (b) is <= ROW_TILE_CAP, and (c)
    leaves >= 2 grid steps so v7x can split rows across both TensorCores."""
    act_budget = max(_VMEM_BUDGET_BYTES - weight_vmem_bytes, 2 << 20)
    by_vmem = act_budget // (16 * cp)                 # x + out, f32, 2 buffers each
    tile = min(ROW_TILE_CAP, by_vmem, _round_up(n_rows, 8))
    if n_rows >= 16:
        tile = min(tile, _round_up(-(-n_rows // 2), 8))
    return max(8, (tile // 8) * 8)


# ---------------------------------------------------------------------------
# Host wrapper
# ---------------------------------------------------------------------------
def spiking_res_block(x, prepped):
    """Forward pass. `prepped` must come from prepare_params (call it once).

    x: (..., C) float array with C == in_channels == out_channels.
    Returns a float32 array of the same shape.
    """
    w1, t1, w2, t2 = prepped["w1"], prepped["t1"], prepped["w2"], prepped["t2"]
    Cp = w1.shape[0]

    orig_shape = x.shape
    C = orig_shape[-1]
    x2 = x.reshape(-1, C).astype(jnp.float32)
    N = x2.shape[0]

    # Channel padding only if C is not lane-aligned (rare).  The row axis is
    # never padded: cdiv grid + Pallas partial-block store masking handles
    # ragged N without extra HBM copies of x / out.
    if Cp != C:
        x2 = jnp.pad(x2, ((0, 0), (0, Cp - C)))

    # Weights stay fully VMEM-resident.  Once their footprint is significant,
    # single-buffer them (constant index_map => double buffering wastes VMEM).
    single_buffer_weights = Cp >= 1024
    buf_count = 1 if single_buffer_weights else 2
    weight_vmem = buf_count * (2 * Cp * Cp * 2 + 2 * 8 * Cp * 4)
    weight_mode = (
        dict(pipeline_mode=pl.Buffered(1)) if single_buffer_weights else {}
    )

    row_tile = _choose_row_tile(N, Cp, weight_vmem)
    grid = (pl.cdiv(N, row_tile),)

    needed_vmem = weight_vmem + 16 * row_tile * Cp + (2 << 20)
    vmem_limit = int(min(max(needed_vmem * 5 // 4, 32 << 20), 96 << 20))

    cost = pl.CostEstimate(
        flops=4 * N * Cp * Cp,                     # two (N,Cp)x(Cp,Cp) matmuls
        transcendentals=0,
        bytes_accessed=8 * N * Cp + 4 * Cp * Cp,   # x read + out write + weights
    )

    out = pl.pallas_call(
        spiking_res_block_kernel,
        out_shape=jax.ShapeDtypeStruct((N, Cp), jnp.float32),
        grid_spec=pltpu.PrefetchScalarGridSpec(
            num_scalar_prefetch=0,
            grid=grid,
            in_specs=[
                pl.BlockSpec((row_tile, Cp), lambda i: (i, 0)),           # x rows
                pl.BlockSpec((Cp, Cp), lambda i: (0, 0), **weight_mode),  # w1
                pl.BlockSpec((1, Cp), lambda i: (0, 0), **weight_mode),   # V_TH-b1
                pl.BlockSpec((Cp, Cp), lambda i: (0, 0), **weight_mode),  # w2
                pl.BlockSpec((1, Cp), lambda i: (0, 0), **weight_mode),   # V_TH-b2
            ],
            out_specs=pl.BlockSpec((row_tile, Cp), lambda i: (i, 0)),
        ),
        compiler_params=pltpu.CompilerParams(
            # Row tiles are independent -> shard across TCs on v7x.
            dimension_semantics=("parallel",),
            vmem_limit_bytes=vmem_limit,
        ),
        cost_estimate=cost,
    )(x2, w1, t1, w2, t2)

    if Cp != C:
        out = out[:, :C]
    return out.reshape(orig_shape)


# ---------------------------------------------------------------------------
# Init + reference
# ---------------------------------------------------------------------------
def init_params(key, channels):
    """PyTorch nn.Linear-style init: U(-1/sqrt(fan_in), 1/sqrt(fan_in)).

    Weights stored (in, out) so the kernel computes x @ W + b, equivalent to
    torch's x @ W.T + b with W stored (out, in).
    """
    k1, k2, k3, k4 = jax.random.split(key, 4)
    bound = 1.0 / (channels ** 0.5)

    def u(k, shape):
        return jax.random.uniform(k, shape, jnp.float32, -bound, bound)

    return {
        "w1": u(k1, (channels, channels)), "b1": u(k2, (1, channels)),
        "w2": u(k3, (channels, channels)), "b2": u(k4, (1, channels)),
    }


def spiking_res_block_ref(x, params):
    """Pure-JAX reference mirroring the kernel's numerics (bf16 MXU, f32 acc,
    bias folded into the threshold)."""
    w1 = params["w1"].astype(jnp.bfloat16)
    w2 = params["w2"].astype(jnp.bfloat16)
    t1 = V_TH - params["b1"]
    t2 = V_TH - params["b2"]
    h1 = jnp.dot(x.astype(jnp.bfloat16), w1, preferred_element_type=jnp.float32)
    s1 = (h1 >= t1).astype(jnp.bfloat16)
    h2 = jnp.dot(s1, w2, preferred_element_type=jnp.float32)
    s2 = (h2 >= t2).astype(jnp.float32)
    return s2 + x


if __name__ == "__main__":
    key = jax.random.PRNGKey(0)
    kx, kp = jax.random.split(key)

    # in_channels == out_channels (required by the identity residual path).
    B, T, C = 2, 128, 128
    x = jax.random.normal(kx, (B, T, C), jnp.float32)
    params = init_params(kp, C)
    prepped = prepare_params(params)    # pad / cast / threshold-fold once

    fwd = jax.jit(spiking_res_block)
    out = jax.block_until_ready(fwd(x, prepped))

    ref = spiking_res_block_ref(x, params)

    assert out.shape == x.shape, out.shape
    assert bool(jnp.all(jnp.isfinite(out)))
    assert bool(jnp.allclose(out, ref, atol=1e-3, rtol=0.0)), float(
        jnp.max(jnp.abs(out - ref))
    )
    print("KERNEL_OK")
</pallas_src>

<mosaic_0001>
module attributes {stable_mosaic.version = 11 : i64} {
  func.func @spiking_res_block_kernel(%arg0: i32, %arg1: memref<128x128xf32, #tpu.memory_space<vmem>>, %arg2: memref<128x128xbf16, #tpu.memory_space<vmem>>, %arg3: memref<1x128xf32, #tpu.memory_space<vmem>>, %arg4: memref<128x128xbf16, #tpu.memory_space<vmem>>, %arg5: memref<1x128xf32, #tpu.memory_space<vmem>>, %arg6: memref<128x128xf32, #tpu.memory_space<vmem>>) attributes {dimension_semantics = [#tpu.dimension_semantics<parallel>], iteration_bounds = array<i64: 2>, scalar_prefetch = 0 : i64, scratch_operands = 0 : i64, tpu.core_type = #tpu.core_type<tc>, window_params = [{transform_indices = @transform_0, window_bounds = array<i64: 128, 128>}, {pipeline_mode = #tpu.pipeline_mode<synchronous>, transform_indices = @transform_1, window_bounds = array<i64: 128, 128>}, {pipeline_mode = #tpu.pipeline_mode<synchronous>, transform_indices = @transform_2, window_bounds = array<i64: 1, 128>}, {pipeline_mode = #tpu.pipeline_mode<synchronous>, transform_indices = @transform_3, window_bounds = array<i64: 128, 128>}, {pipeline_mode = #tpu.pipeline_mode<synchronous>, transform_indices = @transform_4, window_bounds = array<i64: 1, 128>}, {transform_indices = @transform_5, window_bounds = array<i64: 128, 128>}]} {
    %c0 = arith.constant 0 : index
    %c0_0 = arith.constant 0 : index
    %0 = vector.load %arg1[%c0, %c0_0] : memref<128x128xf32, #tpu.memory_space<vmem>>, vector<128x128xf32>
    %1 = arith.truncf %0 : vector<128x128xf32> to vector<128x128xbf16>
    %c0_1 = arith.constant 0 : index
    %c0_2 = arith.constant 0 : index
    %2 = vector.load %arg2[%c0_1, %c0_2] : memref<128x128xbf16, #tpu.memory_space<vmem>>, vector<128x128xbf16>
    %cst = arith.constant dense<0.000000e+00> : vector<128x128xf32>
    %3 = tpu.matmul %1, %2, %cst {dimension_numbers = #tpu.dot_dimension_numbers<[1], [0], [0], [1], [0, 0, 1, 1], [], []>} : vector<128x128xbf16>, vector<128x128xbf16>, vector<128x128xf32> -> vector<128x128xf32>
    %c0_3 = arith.constant 0 : index
    %c0_4 = arith.constant 0 : index
    %4 = vector.load %arg3[%c0_3, %c0_4] : memref<1x128xf32, #tpu.memory_space<vmem>>, vector<1x128xf32>
    %5 = vector.broadcast %4 : vector<1x128xf32> to vector<128x128xf32>
    %6 = arith.cmpf oge, %3, %5 : vector<128x128xf32>
    %7 = arith.extui %6 : vector<128x128xi1> to vector<128x128xi32>
    %8 = arith.sitofp %7 : vector<128x128xi32> to vector<128x128xf32>
    %9 = arith.truncf %8 : vector<128x128xf32> to vector<128x128xbf16>
    %c0_5 = arith.constant 0 : index
    %c0_6 = arith.constant 0 : index
    %10 = vector.load %arg4[%c0_5, %c0_6] : memref<128x128xbf16, #tpu.memory_space<vmem>>, vector<128x128xbf16>
    %cst_7 = arith.constant dense<0.000000e+00> : vector<128x128xf32>
    %11 = tpu.matmul %9, %10, %cst_7 {dimension_numbers = #tpu.dot_dimension_numbers<[1], [0], [0], [1], [0, 0, 1, 1], [], []>} : vector<128x128xbf16>, vector<128x128xbf16>, vector<128x128xf32> -> vector<128x128xf32>
    %c0_8 = arith.constant 0 : index
    %c0_9 = arith.constant 0 : index
    %12 = vector.load %arg5[%c0_8, %c0_9] : memref<1x128xf32, #tpu.memory_space<vmem>>, vector<1x128xf32>
    %13 = vector.broadcast %12 : vector<1x128xf32> to vector<128x128xf32>
    %14 = arith.cmpf oge, %11, %13 : vector<128x128xf32>
    %15 = arith.extui %14 : vector<128x128xi1> to vector<128x128xi32>
    %16 = arith.sitofp %15 : vector<128x128xi32> to vector<128x128xf32>
    %17 = arith.addf %16, %0 : vector<128x128xf32>
    %c0_10 = arith.constant 0 : index
    %c0_11 = arith.constant 0 : index
    %18 = vector.load %arg6[%c0_10, %c0_11] : memref<128x128xf32, #tpu.memory_space<vmem>>, vector<128x128xf32>
    tpu.vector_store %arg6[%c0_10, %c0_11], %17 {strides = array<i32>} : memref<128x128xf32, #tpu.memory_space<vmem>>, vector<128x128xf32>,
    return
  }
  func.func @transform_0(%arg0: i32) -> (i32, i32) {
    %c0_i32 = arith.constant 0 : i32
    %c0_i32_0 = arith.constant 0 : i32
    return %arg0, %c0_i32 : i32, i32
  }
  func.func @transform_1(%arg0: i32) -> (i32, i32) {
    %c0_i32 = arith.constant 0 : i32
    %c0_i32_0 = arith.constant 0 : i32
    %c0_i32_1 = arith.constant 0 : i32
    return %c0_i32, %c0_i32_0 : i32, i32
  }
  func.func @transform_2(%arg0: i32) -> (i32, i32) {
    %c0_i32 = arith.constant 0 : i32
    %c0_i32_0 = arith.constant 0 : i32
    %c0_i32_1 = arith.constant 0 : i32
    return %c0_i32, %c0_i32_0 : i32, i32
  }
  func.func @transform_3(%arg0: i32) -> (i32, i32) {
    %c0_i32 = arith.constant 0 : i32
    %c0_i32_0 = arith.constant 0 : i32
    %c0_i32_1 = arith.constant 0 : i32
    return %c0_i32, %c0_i32_0 : i32, i32
  }
  func.func @transform_4(%arg0: i32) -> (i32, i32) {
    %c0_i32 = arith.constant 0 : i32
    %c0_i32_0 = arith.constant 0 : i32
    %c0_i32_1 = arith.constant 0 : i32
    return %c0_i32, %c0_i32_0 : i32, i32
  }
  func.func @transform_5(%arg0: i32) -> (i32, i32) {
    %c0_i32 = arith.constant 0 : i32
    %c0_i32_0 = arith.constant 0 : i32
    return %arg0, %c0_i32 : i32, i32
  }
}

</mosaic_0001>

<llo_original>
// kernel: spiking_res_block.1
$region0: #{spiking_res_block.1}
  #allocation0 [shape = 'u32[]', space=smem, size = 0x4, offset = 0x4, fixed_abs, tag = 'smem constant byte address 0x4 - core index']
  #allocation1 [shape = 'u32[144,128]{1,0:T(1,128)}', space=vmem, size = 0x12000, scoped, tag = 'internal scratch']
  %s0 = inlined_call_operand.hbm [shape: f32[256,128], index: 0, kind: input, shape index: {}]
  %s1 = inlined_call_operand.hbm [shape: bf16[128,128], index: 1, kind: input, shape index: {}]
  %s2 = inlined_call_operand.vmem [shape: f32[1,128], index: 2, kind: input, shape index: {}]
  %s3 = inlined_call_operand.hbm [shape: bf16[128,128], index: 3, kind: input, shape index: {}]
  %s4 = inlined_call_operand.vmem [shape: f32[1,128], index: 4, kind: input, shape index: {}]
  %s5 = inlined_call_operand.hbm [shape: f32[256,128], index: 5, kind: output, shape index: {}]
  %s6 = sld [smem:[#allocation0]]
  $region65: #{spiking_res_block.1} parent=0
    _
  %s8 = ssub.s32 1, %s6
  %s9 = scalar_select 0, %s8, %s6
  $region1: #{spiking_res_block.1} parent=0
    #allocation2 [shape = 'u8[131072]{0}', space=vmem, size = 0x20000, scoped, tag = 'input window, operand 0']
    #allocation3 [shape = 's32[2]{0}', space=sflag, size = 0x8, scoped, tag = 'scoped memory for spiking_res_block.1']
    #allocation4 [shape = 's32[2]{0}', space=sflag, size = 0x8, scoped, tag = 'scoped memory for spiking_res_block.1']
    #allocation5 [shape = 'u8[32768]{0}', space=vmem, size = 0x8000, scoped, tag = 'input window, operand 1, single buffered']
    #allocation6 [shape = 's32[1]{0}', space=sflag, size = 0x4, scoped, tag = 'scoped memory for spiking_res_block.1']
    #allocation7 [shape = 'u8[32768]{0}', space=vmem, size = 0x8000, scoped, tag = 'input window, operand 3, single buffered']
    #allocation8 [shape = 'u8[131072]{0}', space=vmem, size = 0x20000, scoped, tag = 'output window, operand 0']
    %10 = vsyncpa [#allocation3], 0
    %s11 = scalar_lea.sflag [#allocation3], 1
    %12 = vsyncpa %s11, 0
    %13 = vsyncpa [#allocation6], 0
    %14 = vsyncpa [#allocation4], 0
    %s15 = scalar_lea.sflag [#allocation4], 1
    %16 = vsyncpa %s15, 0
    loop: start=0, step=1, limit=4
    $region2: #{spiking_res_block.1} parent=1 // loop_pre_header
      _
    $region3: #{spiking_res_block.1} parent=1 // loop_header
      %s18 = sphi 0, %s22
      %p19 = scmp.ge.s32.totalorder %s18, 4
      %s28 = sphi 0, %s30
      %s31 = sphi 0, %s28
      %s32 = sphi 0, %s31
      %s48 = sphi 0, %s32
      %s52 = sphi 0, %s52
      %s54 = sphi 0, %s52
      %s55 = sphi 0, %s54
      %s69 = sphi 0, %s55
      %s73 = sphi 0, %s73
      %s75 = sphi 0, %s73
      %s76 = sphi 0, %s75
      %s90 = sphi 0, %s76
      %s94 = sphi 0, %s94
      %s96 = sphi 0, %s94
      %s97 = sphi 0, %s96
      %s111 = sphi 0, %s97
      %s115 = sphi 0, %s115
      %s117 = sphi 0, %s115
      %s118 = sphi 0, %s117
      %s132 = sphi 0, %s118
      %s138 = sphi 0, %s140
      %s141 = sphi 0, %s138
      %s142 = sphi 0, %s141
      %s158 = sphi 0, %s142
    $region4: #{spiking_res_block.1} parent=1 // loop_header_branch
      %21 = sbr.rel (%p19) target = $region8
    $region5: #{spiking_res_block.1} parent=1 // loop_body
      %s23 = ssub.s32 %s18, 1
      %s24 = ssub.s32 %s18, 2
      %s25 = sadd.s32 %s18, 1
      %s26 = ssub.s32 %s18, %s25
      %p27 = scmp.eq.s32.totalorder %s26, 0
      %s29 = sadd.s32 %s28, 1
      %s30 = scalar_select %p27, %s28, %s29
      %p33 = pneg %p27
      %p34 = scmp.eq.s32.totalorder %s18, 1
      %p35 = por %p33, %p34
      %p36 = scmp.ne.s32.totalorder %s28, %s31
      %p37 = scmp.eq.s32.totalorder %s18, 0
      %p38 = por %p36, %p37
      %p39 = scmp.ne.s32.totalorder %s28, %s31
      %p40 = scmp.eq.s32.totalorder %s23, 1
      %p41 = por %p39, %p40
      %p42 = scmp.ne.s32.totalorder %s31, %s32
      %p43 = scmp.eq.s32.totalorder %s23, 0
      %p44 = por %p42, %p43
      %p45 = scmp.ne.s32.totalorder %s31, %s32
      %p46 = scmp.eq.s32.totalorder %s24, 1
      %p47 = por %p45, %p46
      %p49 = scmp.ne.s32.totalorder %s32, %s48
      %p50 = scmp.eq.s32.totalorder %s24, 0
      %p51 = por %p49, %p50
      %s53 = sadd.s32 %s52, 1
      %p56 = scmp.eq.s32.totalorder %s18, 1
      %p57 = scmp.ne.s32.totalorder %s52, %s54
      %p58 = scmp.eq.s32.totalorder %s18, 0
      %p59 = por %p57, %p58
      %p60 = scmp.ne.s32.totalorder %s52, %s54
      %p61 = scmp.eq.s32.totalorder %s23, 1
      %p62 = por %p60, %p61
      %p63 = scmp.ne.s32.totalorder %s54, %s55
      %p64 = scmp.eq.s32.totalorder %s23, 0
      %p65 = por %p63, %p64
      %p66 = scmp.ne.s32.totalorder %s54, %s55
      %p67 = scmp.eq.s32.totalorder %s24, 1
      %p68 = por %p66, %p67
      %p70 = scmp.ne.s32.totalorder %s55, %s69
      %p71 = scmp.eq.s32.totalorder %s24, 0
      %p72 = por %p70, %p71
      %s74 = sadd.s32 %s73, 1
      %p77 = scmp.eq.s32.totalorder %s18, 1
      %p78 = scmp.ne.s32.totalorder %s73, %s75
      %p79 = scmp.eq.s32.totalorder %s18, 0
      %p80 = por %p78, %p79
      %p81 = scmp.ne.s32.totalorder %s73, %s75
      %p82 = scmp.eq.s32.totalorder %s23, 1
      %p83 = por %p81, %p82
      %p84 = scmp.ne.s32.totalorder %s75, %s76
      %p85 = scmp.eq.s32.totalorder %s23, 0
      %p86 = por %p84, %p85
      %p87 = scmp.ne.s32.totalorder %s75, %s76
      %p88 = scmp.eq.s32.totalorder %s24, 1
      %p89 = por %p87, %p88
      %p91 = scmp.ne.s32.totalorder %s76, %s90
      %p92 = scmp.eq.s32.totalorder %s24, 0
      %p93 = por %p91, %p92
      %s95 = sadd.s32 %s94, 1
      %p98 = scmp.eq.s32.totalorder %s18, 1
      %p99 = scmp.ne.s32.totalorder %s94, %s96
      %p100 = scmp.eq.s32.totalorder %s18, 0
      %p101 = por %p99, %p100
      %p102 = scmp.ne.s32.totalorder %s94, %s96
      %p103 = scmp.eq.s32.totalorder %s23, 1
      %p104 = por %p102, %p103
      %p105 = scmp.ne.s32.totalorder %s96, %s97
      %p106 = scmp.eq.s32.totalorder %s23, 0
      %p107 = por %p105, %p106
      %p108 = scmp.ne.s32.totalorder %s96, %s97
      %p109 = scmp.eq.s32.totalorder %s24, 1
      %p110 = por %p108, %p109
      %p112 = scmp.ne.s32.totalorder %s97, %s111
      %p113 = scmp.eq.s32.totalorder %s24, 0
      %p114 = por %p112, %p113
      %s116 = sadd.s32 %s115, 1
      %p119 = scmp.eq.s32.totalorder %s18, 1
      %p120 = scmp.ne.s32.totalorder %s115, %s117
      %p121 = scmp.eq.s32.totalorder %s18, 0
      %p122 = por %p120, %p121
      %p123 = scmp.ne.s32.totalorder %s115, %s117
      %p124 = scmp.eq.s32.totalorder %s23, 1
      %p125 = por %p123, %p124
      %p126 = scmp.ne.s32.totalorder %s117, %s118
      %p127 = scmp.eq.s32.totalorder %s23, 0
      %p128 = por %p126, %p127
      %p129 = scmp.ne.s32.totalorder %s117, %s118
      %p130 = scmp.eq.s32.totalorder %s24, 1
      %p131 = por %p129, %p130
      %p133 = scmp.ne.s32.totalorder %s118, %s132
      %p134 = scmp.eq.s32.totalorder %s24, 0
      %p135 = por %p133, %p134
      %s136 = ssub.s32 %s18, %s25
      %p137 = scmp.eq.s32.totalorder %s136, 0
      %s139 = sadd.s32 %s138, 1
      %s140 = scalar_select %p137, %s138, %s139
      %p143 = pneg %p137
      %p144 = scmp.eq.s32.totalorder %s18, 1
      %p145 = por %p143, %p144
      %p146 = scmp.ne.s32.totalorder %s138, %s141
      %p147 = scmp.eq.s32.totalorder %s18, 0
      %p148 = por %p146, %p147
      %p149 = scmp.ne.s32.totalorder %s138, %s141
      %p150 = scmp.eq.s32.totalorder %s23, 1
      %p151 = por %p149, %p150
      %p152 = scmp.ne.s32.totalorder %s141, %s142
      %p153 = scmp.eq.s32.totalorder %s23, 0
      %p154 = por %p152, %p153
      %p155 = scmp.ne.s32.totalorder %s141, %s142
      %p156 = scmp.eq.s32.totalorder %s24, 1
      %p157 = por %p155, %p156
      %p159 = scmp.ne.s32.totalorder %s142, %s158
      %p160 = scmp.eq.s32.totalorder %s24, 0
      %p161 = por %p159, %p160
      %p162 = scmp.le.s32.totalorder 1, %s18
      %p163 = scmp.lt.s32.totalorder %s18, 3
      %p164 = pnand %p162, %p163
      %p165 = pneg %p164
      // Predicated region
      $region9: #{spiking_res_block.1} parent=5 // pred_check
        _
      $region10: #{spiking_res_block.1} parent=5 // pred_check_branch
        %167 = sbr.rel (%p164) target = $region12
      $region11: #{spiking_res_block.1} parent=5 // pred_region
        %s168 = ssub.s32 %s18, 1
        // Predicated region
        $region13: #{spiking_res_block.1} parent=11 // pred_check
          %p169 = pneg %p65
        $region14: #{spiking_res_block.1} parent=11 // pred_check_branch
          %171 = sbr.rel (%p169) target = $region16
        $region15: #{spiking_res_block.1} parent=11 // pred_region
          %s173 = ssub.s32 1024, 1024
          %174 = vsyncadd [#allocation6], %s173
          %s175 = sshll.u32 [#allocation5], 4
          %s176 = int_to_ptr.vmem [resolvable:$true] %s175
          %181 = dma.hbm_to_vmem [thread:$0]  %s1, 1024, %s176, [#allocation6], 64, 64, 4
        $region16: #{spiking_res_block.1} parent=11 // pred_fallthru
          _
        // Predicated region
        $region17: #{spiking_res_block.1} parent=11 // pred_check
          %p182 = pneg %p86
        $region18: #{spiking_res_block.1} parent=11 // pred_check_branch
          %184 = sbr.rel (%p182) target = $region20
        $region19: #{spiking_res_block.1} parent=11 // pred_region
          _
        $region20: #{spiking_res_block.1} parent=11 // pred_fallthru
          _
        // Predicated region
        $region21: #{spiking_res_block.1} parent=11 // pred_check
          %p185 = pneg %p107
        $region22: #{spiking_res_block.1} parent=11 // pred_check_branch
          %187 = sbr.rel (%p185) target = $region24
        $region23: #{spiking_res_block.1} parent=11 // pred_region
          %s189 = ssub.s32 1024, 1024
          %190 = vsyncadd [#allocation6], %s189
          %s191 = sshll.u32 [#allocation7], 4
          %s192 = int_to_ptr.vmem [resolvable:$true] %s191
          %197 = dma.hbm_to_vmem [thread:$0]  %s3, 1024, %s192, [#allocation6], 64, 64, 4
        $region24: #{spiking_res_block.1} parent=11 // pred_fallthru
          _
        // Predicated region
        $region25: #{spiking_res_block.1} parent=11 // pred_check
          %p198 = pneg %p128
        $region26: #{spiking_res_block.1} parent=11 // pred_check_branch
          %200 = sbr.rel (%p198) target = $region28
        $region27: #{spiking_res_block.1} parent=11 // pred_region
          _
        $region28: #{spiking_res_block.1} parent=11 // pred_fallthru
          _
      $region12: #{spiking_res_block.1} parent=5 // pred_fallthru
        _
      %p201 = scmp.lt.s32.totalorder %s18, 2
      // Predicated region
      $region29: #{spiking_res_block.1} parent=5 // pred_check
        %p202 = pneg %p201
      $region30: #{spiking_res_block.1} parent=5 // pred_check_branch
        %204 = sbr.rel (%p202) target = $region32
      $region31: #{spiking_res_block.1} parent=5 // pred_region
        // Predicated region
        $region33: #{spiking_res_block.1} parent=31 // pred_check
          %p205 = pneg %p38
        $region34: #{spiking_res_block.1} parent=31 // pred_check_branch
          %207 = sbr.rel (%p205) target = $region36
        $region35: #{spiking_res_block.1} parent=31 // pred_region
          %s208 = sand.u32 %s28, 1
          %s209 = scalar_lea.sflag [#allocation3], %s208
          %s210 = sand.u32 %s28, 1
          %s211 = smul.addr %s210, 128
          %s212 = scalar_lea.vmem [#allocation2], %s211
          %s213 = smul.u32 16, %s18
          %s215 = ssub.s32 2048, 2048
          %216 = vsyncadd %s209, %s215
          %s217 = smul.addr %s213, 128
          %s218 = scalar_lea.hbm %s0, %s217
          %s219 = sshll.u32 %s212, 4
          %s220 = int_to_ptr.vmem [resolvable:$true] %s219
          %225 = dma.hbm_to_vmem [thread:$0]  %s218, 2048, %s220, %s209, 128, 128, 8
        $region36: #{spiking_res_block.1} parent=31 // pred_fallthru
          _
      $region32: #{spiking_res_block.1} parent=5 // pred_fallthru
        _
      %p226 = scmp.le.s32.totalorder 1, %s18
      %p227 = scmp.lt.s32.totalorder %s18, 3
      %p228 = pnand %p226, %p227
      %p229 = pneg %p228
      // Predicated region
      $region37: #{spiking_res_block.1} parent=5 // pred_check
        _
      $region38: #{spiking_res_block.1} parent=5 // pred_check_branch
        %231 = sbr.rel (%p228) target = $region40
      $region39: #{spiking_res_block.1} parent=5 // pred_region
        %s232 = ssub.s32 %s18, 1
        %s233 = sand.u32 %s31, 1
        %s234 = scalar_lea.sflag [#allocation3], %s233
        %s235 = sand.u32 %s31, 1
        %s236 = smul.addr %s235, 128
        %s237 = scalar_lea.vmem [#allocation2], %s236
        // Predicated region
        $region41: #{spiking_res_block.1} parent=39 // pred_check
          %p238 = pneg %p44
        $region42: #{spiking_res_block.1} parent=39 // pred_check_branch
          %240 = sbr.rel (%p238) target = $region44
        $region43: #{spiking_res_block.1} parent=39 // pred_region
          %241 = dma.done %s234, 2048
        $region44: #{spiking_res_block.1} parent=39 // pred_fallthru
          _
        // Predicated region
        $region45: #{spiking_res_block.1} parent=39 // pred_check
          %p242 = pneg %p65
        $region46: #{spiking_res_block.1} parent=39 // pred_check_branch
          %244 = sbr.rel (%p242) target = $region48
        $region47: #{spiking_res_block.1} parent=39 // pred_region
          %245 = dma.done [#allocation6], 1024
        $region48: #{spiking_res_block.1} parent=39 // pred_fallthru
          _
        // Predicated region
        $region49: #{spiking_res_block.1} parent=39 // pred_check
          %p246 = pneg %p107
        $region50: #{spiking_res_block.1} parent=39 // pred_check_branch
          %248 = sbr.rel (%p246) target = $region52
        $region51: #{spiking_res_block.1} parent=39 // pred_region
          %249 = dma.done [#allocation6], 1024
        $region52: #{spiking_res_block.1} parent=39 // pred_fallthru
          _
        %s250 = sand.u32 %s31, 1
        %s251 = scalar_lea.sflag [#allocation3], %s250
        %s252 = sand.u32 %s31, 1
        %s253 = smul.addr %s252, 128
        %s254 = scalar_lea.vmem [#allocation2], %s253
        %p255 = pneg %p44
        %p256 = pneg %p41
        %p257 = pneg %p65
        %p258 = pneg %p62
        %p259 = pneg %p86
        %p260 = pneg %p83
        %p261 = pneg %p107
        %p262 = pneg %p104
        %p263 = pneg %p128
        %p264 = pneg %p125
        %p265 = pneg %p154
        %p266 = pneg %p151
        %s267 = sand.u32 %s141, 1
        %s268 = scalar_lea.sflag [#allocation4], %s267
        %s269 = sand.u32 %s141, 1
        %s270 = smul.addr %s269, 128
        %s271 = scalar_lea.vmem [#allocation8], %s270
        %s272 = smul.u32 16, %s23
        %s273 = smul.u32 16, %s23
        %v275 = vld [vmem:[%s237] sm:$0xff]
        %v276 = vld [vmem:[%s237 + $0x8] sm:$0xff]
        %v277 = vld [vmem:[%s237 + $0x10] sm:$0xff]
        %v278 = vld [vmem:[%s237 + $0x18] sm:$0xff]
        %v279 = vld [vmem:[%s237 + $0x20] sm:$0xff]
        %v280 = vld [vmem:[%s237 + $0x28] sm:$0xff]
        %v281 = vld [vmem:[%s237 + $0x30] sm:$0xff]
        %v282 = vld [vmem:[%s237 + $0x38] sm:$0xff]
        %v283 = vld [vmem:[%s237 + $0x40] sm:$0xff]
        %v284 = vld [vmem:[%s237 + $0x48] sm:$0xff]
        %v285 = vld [vmem:[%s237 + $0x50] sm:$0xff]
        %v286 = vld [vmem:[%s237 + $0x58] sm:$0xff]
        %v287 = vld [vmem:[%s237 + $0x60] sm:$0xff]
        %v288 = vld [vmem:[%s237 + $0x68] sm:$0xff]
        %v289 = vld [vmem:[%s237 + $0x70] sm:$0xff]
        %v290 = vld [vmem:[%s237 + $0x78] sm:$0xff]
        %v291 = vpack.c.bf16 %v276, %v275
        %v292 = vpack.c.bf16 %v278, %v277
        %v293 = vpack.c.bf16 %v280, %v279
        %v294 = vpack.c.bf16 %v282, %v281
        %v295 = vpack.c.bf16 %v284, %v283
        %v296 = vpack.c.bf16 %v286, %v285
        %v297 = vpack.c.bf16 %v288, %v287
        %v298 = vpack.c.bf16 %v290, %v289
        %v299 = vld [vmem:[#allocation5] sm:$0xf]
        %v300 = vld [vmem:[#allocation5 + $0x4] sm:$0xf]
        %v301 = vld [vmem:[#allocation5 + $0x8] sm:$0xf]
        %v302 = vld [vmem:[#allocation5 + $0xc] sm:$0xf]
        %v303 = vld [vmem:[#allocation5 + $0x10] sm:$0xf]
        %v304 = vld [vmem:[#allocation5 + $0x14] sm:$0xf]
        %v305 = vld [vmem:[#allocation5 + $0x18] sm:$0xf]
        %v306 = vld [vmem:[#allocation5 + $0x1c] sm:$0xf]
        %v307 = vld [vmem:[#allocation5 + $0x20] sm:$0xf]
        %v308 = vld [vmem:[#allocation5 + $0x24] sm:$0xf]
        %v309 = vld [vmem:[#allocation5 + $0x28] sm:$0xf]
        %v310 = vld [vmem:[#allocation5 + $0x2c] sm:$0xf]
        %v311 = vld [vmem:[#allocation5 + $0x30] sm:$0xf]
        %v312 = vld [vmem:[#allocation5 + $0x34] sm:$0xf]
        %v313 = vld [vmem:[#allocation5 + $0x38] sm:$0xf]
        %v314 = vld [vmem:[#allocation5 + $0x3c] sm:$0xf]
        %v331 = vunpack.c.l.b16 %v299
        %v332 = vunpack.c.l.b16 %v300
        %v333 = vunpack.c.l.b16 %v301
        %v334 = vunpack.c.l.b16 %v302
        %v335 = vunpack.c.l.b16 %v303
        %v336 = vunpack.c.l.b16 %v304
        %v337 = vunpack.c.l.b16 %v305
        %v338 = vunpack.c.l.b16 %v306
        %v339 = vunpack.c.l.b16 %v307
        %v340 = vunpack.c.l.b16 %v308
        %v341 = vunpack.c.l.b16 %v309
        %v342 = vunpack.c.l.b16 %v310
        %v343 = vunpack.c.l.b16 %v311
        %v344 = vunpack.c.l.b16 %v312
        %v345 = vunpack.c.l.b16 %v313
        %v346 = vunpack.c.l.b16 %v314
        %v347 = vpack.c.b16 %v332, %v331
        %v348 = vpack.c.b16 %v334, %v333
        %v349 = vpack.c.b16 %v336, %v335
        %v350 = vpack.c.b16 %v338, %v337
        %v351 = vpack.c.b16 %v340, %v339
        %v352 = vpack.c.b16 %v342, %v341
        %v353 = vpack.c.b16 %v344, %v343
        %v354 = vpack.c.b16 %v346, %v345
        %363 = vmatprep.subr.bf16.mxu0 0
        %364 = vmatpush1.bf16.msra.mxu0 %v354
        %365 = vmatprep.subr.bf16.mxu0 0
        %366 = vmatpush1.bf16.msra.mxu0 %v353
        %367 = vmatprep.subr.bf16.mxu0 0
        %368 = vmatpush1.bf16.msra.mxu0 %v352
        %369 = vmatprep.subr.bf16.mxu0 0
        %370 = vmatpush1.bf16.msra.mxu0 %v351
        %371 = vmatprep.subr.bf16.mxu0 0
        %372 = vmatpush1.bf16.msra.mxu0 %v350
        %373 = vmatprep.subr.bf16.mxu0 0
        %374 = vmatpush1.bf16.msra.mxu0 %v349
        %375 = vmatprep.subr.bf16.mxu0 0
        %376 = vmatpush1.bf16.msra.mxu0 %v348
        %377 = vmatprep.subr.bf16.mxu0 0
        %378 = vmatpush1.bf16.msra.mxu0 %v347
        %379 = vmatprep.subr.bf16.mxu0 0
        %380 = vmatpush2.bf16.msra.mxu0 0
        %381 = vmatprep.subr.bf16.mxu0 0
        %382 = vmatpush2.bf16.msra.mxu0 0
        %383 = vmatprep.subr.bf16.mxu0 0
        %384 = vmatpush2.bf16.msra.mxu0 0
        %385 = vmatprep.subr.bf16.mxu0 0
        %386 = vmatpush2.bf16.msra.mxu0 0
        %387 = vmatprep.subr.bf16.mxu0 0
        %388 = vmatpush2.bf16.msra.mxu0 0
        %389 = vmatprep.subr.bf16.mxu0 0
        %390 = vmatpush2.bf16.msra.mxu0 0
        %391 = vmatprep.subr.bf16.mxu0 0
        %392 = vmatpush2.bf16.msra.mxu0 0
        %393 = vmatprep.subr.bf16.mxu0 0
        %394 = vmatpush2.bf16.msra.mxu0 0
        %395 = vmatprep.mubr.bf16.mxu0 0
        %396 = vmatmul.mubr.bf16.gmra.mxu0 %v291
        %v397 = vpop.f32.mrf.mxu0
        %v398 = vadd.f32 0.0, %v397
        %v399 = vpop.f32.mrf.mxu0
        %v400 = vpop.f32.mrf.mxu0
        %v401 = vadd.f32 0.0, %v400
        %v402 = vpop.f32.mrf.mxu0
        %403 = vmatprep.mubr.bf16.mxu0 0
        %404 = vmatmul.mubr.bf16.gmra.mxu0 %v292
        %v405 = vpop.f32.mrf.mxu0
        %v406 = vadd.f32 0.0, %v405
        %v407 = vpop.f32.mrf.mxu0
        %v408 = vpop.f32.mrf.mxu0
        %v409 = vadd.f32 0.0, %v408
        %v410 = vpop.f32.mrf.mxu0
        %411 = vmatprep.mubr.bf16.mxu0 0
        %412 = vmatmul.mubr.bf16.gmra.mxu0 %v293
        %v413 = vpop.f32.mrf.mxu0
        %v414 = vadd.f32 0.0, %v413
        %v415 = vpop.f32.mrf.mxu0
        %v416 = vpop.f32.mrf.mxu0
        %v417 = vadd.f32 0.0, %v416
        %v418 = vpop.f32.mrf.mxu0
        %419 = vmatprep.mubr.bf16.mxu0 0
        %420 = vmatmul.mubr.bf16.gmra.mxu0 %v294
        %v421 = vpop.f32.mrf.mxu0
        %v422 = vadd.f32 0.0, %v421
        %v423 = vpop.f32.mrf.mxu0
        %v424 = vpop.f32.mrf.mxu0
        %v425 = vadd.f32 0.0, %v424
        %v426 = vpop.f32.mrf.mxu0
        %427 = vmatprep.mubr.bf16.mxu0 0
        %428 = vmatmul.mubr.bf16.gmra.mxu0 %v295
        %v429 = vpop.f32.mrf.mxu0
        %v430 = vadd.f32 0.0, %v429
        %v431 = vpop.f32.mrf.mxu0
        %v432 = vpop.f32.mrf.mxu0
        %v433 = vadd.f32 0.0, %v432
        %v434 = vpop.f32.mrf.mxu0
        %435 = vmatprep.mubr.bf16.mxu0 0
        %436 = vmatmul.mubr.bf16.gmra.mxu0 %v296
        %v437 = vpop.f32.mrf.mxu0
        %v438 = vadd.f32 0.0, %v437
        %v439 = vpop.f32.mrf.mxu0
        %v440 = vpop.f32.mrf.mxu0
        %v441 = vadd.f32 0.0, %v440
        %v442 = vpop.f32.mrf.mxu0
        %443 = vmatprep.mubr.bf16.mxu0 0
        %444 = vmatmul.mubr.bf16.gmra.mxu0 %v297
        %v445 = vpop.f32.mrf.mxu0
        %v446 = vadd.f32 0.0, %v445
        %v447 = vpop.f32.mrf.mxu0
        %v448 = vpop.f32.mrf.mxu0
        %v449 = vadd.f32 0.0, %v448
        %v450 = vpop.f32.mrf.mxu0
        %451 = vmatprep.mubr.bf16.mxu0 0
        %452 = vmatmul.mubr.bf16.gmra.mxu0 %v298
        %v453 = vpop.f32.mrf.mxu0
        %v454 = vadd.f32 0.0, %v453
        %v455 = vpop.f32.mrf.mxu0
        %v456 = vpop.f32.mrf.mxu0
        %v457 = vadd.f32 0.0, %v456
        %v458 = vpop.f32.mrf.mxu0
        %459 = vdwg.mxu0
        %v460 = vld [vmem:[%s2] sm:$0x1]
        %v462 = vlaneseq
        %v463 = vshrl.u32 %v462, 7
        %v464 = vsub.s32 0, %v463
        %v465 = vrot.slane %v460, %v464
        %vm467 = vcmp.ge.f32.partialorder %v398, %v465
        %vm468 = vcmp.ge.f32.partialorder %v401, %v465
        %vm469 = vcmp.ge.f32.partialorder %v406, %v465
        %vm470 = vcmp.ge.f32.partialorder %v409, %v465
        %vm471 = vcmp.ge.f32.partialorder %v414, %v465
        %vm472 = vcmp.ge.f32.partialorder %v417, %v465
        %vm473 = vcmp.ge.f32.partialorder %v422, %v465
        %vm474 = vcmp.ge.f32.partialorder %v425, %v465
        %vm475 = vcmp.ge.f32.partialorder %v430, %v465
        %vm476 = vcmp.ge.f32.partialorder %v433, %v465
        %vm477 = vcmp.ge.f32.partialorder %v438, %v465
        %vm478 = vcmp.ge.f32.partialorder %v441, %v465
        %vm479 = vcmp.ge.f32.partialorder %v446, %v465
        %vm480 = vcmp.ge.f32.partialorder %v449, %v465
        %vm481 = vcmp.ge.f32.partialorder %v454, %v465
        %vm482 = vcmp.ge.f32.partialorder %v457, %v465
        %v483 = vsel %vm467, 1, 0
        %v484 = vsel %vm468, 1, 0
        %v485 = vsel %vm469, 1, 0
        %v486 = vsel %vm470, 1, 0
        %v487 = vsel %vm471, 1, 0
        %v488 = vsel %vm472, 1, 0
        %v489 = vsel %vm473, 1, 0
        %v490 = vsel %vm474, 1, 0
        %v491 = vsel %vm475, 1, 0
        %v492 = vsel %vm476, 1, 0
        %v493 = vsel %vm477, 1, 0
        %v494 = vsel %vm478, 1, 0
        %v495 = vsel %vm479, 1, 0
        %v496 = vsel %vm480, 1, 0
        %v497 = vsel %vm481, 1, 0
        %v498 = vsel %vm482, 1, 0
        %v499 = vcvt.s32.f32 %v483
        %v500 = vcvt.s32.f32 %v484
        %v501 = vcvt.s32.f32 %v485
        %v502 = vcvt.s32.f32 %v486
        %v503 = vcvt.s32.f32 %v487
        %v504 = vcvt.s32.f32 %v488
        %v505 = vcvt.s32.f32 %v489
        %v506 = vcvt.s32.f32 %v490
        %v507 = vcvt.s32.f32 %v491
        %v508 = vcvt.s32.f32 %v492
        %v509 = vcvt.s32.f32 %v493
        %v510 = vcvt.s32.f32 %v494
        %v511 = vcvt.s32.f32 %v495
        %v512 = vcvt.s32.f32 %v496
        %v513 = vcvt.s32.f32 %v497
        %v514 = vcvt.s32.f32 %v498
        %v515 = vpack.c.bf16 %v500, %v499
        %v516 = vpack.c.bf16 %v502, %v501
        %v517 = vpack.c.bf16 %v504, %v503
        %v518 = vpack.c.bf16 %v506, %v505
        %v519 = vpack.c.bf16 %v508, %v507
        %v520 = vpack.c.bf16 %v510, %v509
        %v521 = vpack.c.bf16 %v512, %v511
        %v522 = vpack.c.bf16 %v514, %v513
        %v523 = vld [vmem:[#allocation7] sm:$0xf]
        %v524 = vld [vmem:[#allocation7 + $0x4] sm:$0xf]
        %v525 = vld [vmem:[#allocation7 + $0x8] sm:$0xf]
        %v526 = vld [vmem:[#allocation7 + $0xc] sm:$0xf]
        %v527 = vld [vmem:[#allocation7 + $0x10] sm:$0xf]
        %v528 = vld [vmem:[#allocation7 + $0x14] sm:$0xf]
        %v529 = vld [vmem:[#allocation7 + $0x18] sm:$0xf]
        %v530 = vld [vmem:[#allocation7 + $0x1c] sm:$0xf]
        %v531 = vld [vmem:[#allocation7 + $0x20] sm:$0xf]
        %v532 = vld [vmem:[#allocation7 + $0x24] sm:$0xf]
        %v533 = vld [vmem:[#allocation7 + $0x28] sm:$0xf]
        %v534 = vld [vmem:[#allocation7 + $0x2c] sm:$0xf]
        %v535 = vld [vmem:[#allocation7 + $0x30] sm:$0xf]
        %v536 = vld [vmem:[#allocation7 + $0x34] sm:$0xf]
        %v537 = vld [vmem:[#allocation7 + $0x38] sm:$0xf]
        %v538 = vld [vmem:[#allocation7 + $0x3c] sm:$0xf]
        %v555 = vunpack.c.l.b16 %v523
        %v556 = vunpack.c.l.b16 %v524
        %v557 = vunpack.c.l.b16 %v525
        %v558 = vunpack.c.l.b16 %v526
        %v559 = vunpack.c.l.b16 %v527
        %v560 = vunpack.c.l.b16 %v528
        %v561 = vunpack.c.l.b16 %v529
        %v562 = vunpack.c.l.b16 %v530
        %v563 = vunpack.c.l.b16 %v531
        %v564 = vunpack.c.l.b16 %v532
        %v565 = vunpack.c.l.b16 %v533
        %v566 = vunpack.c.l.b16 %v534
        %v567 = vunpack.c.l.b16 %v535
        %v568 = vunpack.c.l.b16 %v536
        %v569 = vunpack.c.l.b16 %v537
        %v570 = vunpack.c.l.b16 %v538
        %v571 = vpack.c.b16 %v556, %v555
        %v572 = vpack.c.b16 %v558, %v557
        %v573 = vpack.c.b16 %v560, %v559
        %v574 = vpack.c.b16 %v562, %v561
        %v575 = vpack.c.b16 %v564, %v563
        %v576 = vpack.c.b16 %v566, %v565
        %v577 = vpack.c.b16 %v568, %v567
        %v578 = vpack.c.b16 %v570, %v569
        %587 = vmatprep.subr.bf16.mxu0 0
        %588 = vmatpush1.bf16.msra.mxu0 %v578
        %589 = vmatprep.subr.bf16.mxu0 0
        %590 = vmatpush1.bf16.msra.mxu0 %v577
        %591 = vmatprep.subr.bf16.mxu0 0
        %592 = vmatpush1.bf16.msra.mxu0 %v576
        %593 = vmatprep.subr.bf16.mxu0 0
        %594 = vmatpush1.bf16.msra.mxu0 %v575
        %595 = vmatprep.subr.bf16.mxu0 0
        %596 = vmatpush1.bf16.msra.mxu0 %v574
        %597 = vmatprep.subr.bf16.mxu0 0
        %598 = vmatpush1.bf16.msra.mxu0 %v573
        %599 = vmatprep.subr.bf16.mxu0 0
        %600 = vmatpush1.bf16.msra.mxu0 %v572
        %601 = vmatprep.subr.bf16.mxu0 0
        %602 = vmatpush1.bf16.msra.mxu0 %v571
        %603 = vmatprep.subr.bf16.mxu0 0
        %604 = vmatpush2.bf16.msra.mxu0 0
        %605 = vmatprep.subr.bf16.mxu0 0
        %606 = vmatpush2.bf16.msra.mxu0 0
        %607 = vmatprep.subr.bf16.mxu0 0
        %608 = vmatpush2.bf16.msra.mxu0 0
        %609 = vmatprep.subr.bf16.mxu0 0
        %610 = vmatpush2.bf16.msra.mxu0 0
        %611 = vmatprep.subr.bf16.mxu0 0
        %612 = vmatpush2.bf16.msra.mxu0 0
        %613 = vmatprep.subr.bf16.mxu0 0
        %614 = vmatpush2.bf16.msra.mxu0 0
        %615 = vmatprep.subr.bf16.mxu0 0
        %616 = vmatpush2.bf16.msra.mxu0 0
        %617 = vmatprep.subr.bf16.mxu0 0
        %618 = vmatpush2.bf16.msra.mxu0 0
        %619 = vmatprep.mubr.bf16.mxu0 0
        %620 = vmatmul.mubr.bf16.gmra.mxu0 %v515
        %v621 = vpop.f32.mrf.mxu0
        %v622 = vadd.f32 0.0, %v621
        %v623 = vpop.f32.mrf.mxu0
        %v624 = vpop.f32.mrf.mxu0
        %v625 = vadd.f32 0.0, %v624
        %v626 = vpop.f32.mrf.mxu0
        %627 = vmatprep.mubr.bf16.mxu0 0
        %628 = vmatmul.mubr.bf16.gmra.mxu0 %v516
        %v629 = vpop.f32.mrf.mxu0
        %v630 = vadd.f32 0.0, %v629
        %v631 = vpop.f32.mrf.mxu0
        %v632 = vpop.f32.mrf.mxu0
        %v633 = vadd.f32 0.0, %v632
        %v634 = vpop.f32.mrf.mxu0
        %635 = vmatprep.mubr.bf16.mxu0 0
        %636 = vmatmul.mubr.bf16.gmra.mxu0 %v517
        %v637 = vpop.f32.mrf.mxu0
        %v638 = vadd.f32 0.0, %v637
        %v639 = vpop.f32.mrf.mxu0
        %v640 = vpop.f32.mrf.mxu0
        %v641 = vadd.f32 0.0, %v640
        %v642 = vpop.f32.mrf.mxu0
        %643 = vmatprep.mubr.bf16.mxu0 0
        %644 = vmatmul.mubr.bf16.gmra.mxu0 %v518
        %v645 = vpop.f32.mrf.mxu0
        %v646 = vadd.f32 0.0, %v645
        %v647 = vpop.f32.mrf.mxu0
        %v648 = vpop.f32.mrf.mxu0
        %v649 = vadd.f32 0.0, %v648
        %v650 = vpop.f32.mrf.mxu0
        %651 = vmatprep.mubr.bf16.mxu0 0
        %652 = vmatmul.mubr.bf16.gmra.mxu0 %v519
        %v653 = vpop.f32.mrf.mxu0
        %v654 = vadd.f32 0.0, %v653
        %v655 = vpop.f32.mrf.mxu0
        %v656 = vpop.f32.mrf.mxu0
        %v657 = vadd.f32 0.0, %v656
        %v658 = vpop.f32.mrf.mxu0
        %659 = vmatprep.mubr.bf16.mxu0 0
        %660 = vmatmul.mubr.bf16.gmra.mxu0 %v520
        %v661 = vpop.f32.mrf.mxu0
        %v662 = vadd.f32 0.0, %v661
        %v663 = vpop.f32.mrf.mxu0
        %v664 = vpop.f32.mrf.mxu0
        %v665 = vadd.f32 0.0, %v664
        %v666 = vpop.f32.mrf.mxu0
        %667 = vmatprep.mubr.bf16.mxu0 0
        %668 = vmatmul.mubr.bf16.gmra.mxu0 %v521
        %v669 = vpop.f32.mrf.mxu0
        %v670 = vadd.f32 0.0, %v669
        %v671 = vpop.f32.mrf.mxu0
        %v672 = vpop.f32.mrf.mxu0
        %v673 = vadd.f32 0.0, %v672
        %v674 = vpop.f32.mrf.mxu0
        %675 = vmatprep.mubr.bf16.mxu0 0
        %676 = vmatmul.mubr.bf16.gmra.mxu0 %v522
        %v677 = vpop.f32.mrf.mxu0
        %v678 = vadd.f32 0.0, %v677
        %v679 = vpop.f32.mrf.mxu0
        %v680 = vpop.f32.mrf.mxu0
        %v681 = vadd.f32 0.0, %v680
        %v682 = vpop.f32.mrf.mxu0
        %683 = vdwg.mxu0
        %v684 = vld [vmem:[%s4] sm:$0x1]
        %v686 = vlaneseq
        %v687 = vshrl.u32 %v686, 7
        %v688 = vsub.s32 0, %v687
        %v689 = vrot.slane %v684, %v688
        %vm691 = vcmp.ge.f32.partialorder %v622, %v689
        %vm692 = vcmp.ge.f32.partialorder %v625, %v689
        %vm693 = vcmp.ge.f32.partialorder %v630, %v689
        %vm694 = vcmp.ge.f32.partialorder %v633, %v689
        %vm695 = vcmp.ge.f32.partialorder %v638, %v689
        %vm696 = vcmp.ge.f32.partialorder %v641, %v689
        %vm697 = vcmp.ge.f32.partialorder %v646, %v689
        %vm698 = vcmp.ge.f32.partialorder %v649, %v689
        %vm699 = vcmp.ge.f32.partialorder %v654, %v689
        %vm700 = vcmp.ge.f32.partialorder %v657, %v689
        %vm701 = vcmp.ge.f32.partialorder %v662, %v689
        %vm702 = vcmp.ge.f32.partialorder %v665, %v689
        %vm703 = vcmp.ge.f32.partialorder %v670, %v689
        %vm704 = vcmp.ge.f32.partialorder %v673, %v689
        %vm705 = vcmp.ge.f32.partialorder %v678, %v689
        %vm706 = vcmp.ge.f32.partialorder %v681, %v689
        %v707 = vsel %vm691, 1, 0
        %v708 = vsel %vm692, 1, 0
        %v709 = vsel %vm693, 1, 0
        %v710 = vsel %vm694, 1, 0
        %v711 = vsel %vm695, 1, 0
        %v712 = vsel %vm696, 1, 0
        %v713 = vsel %vm697, 1, 0
        %v714 = vsel %vm698, 1, 0
        %v715 = vsel %vm699, 1, 0
        %v716 = vsel %vm700, 1, 0
        %v717 = vsel %vm701, 1, 0
        %v718 = vsel %vm702, 1, 0
        %v719 = vsel %vm703, 1, 0
        %v720 = vsel %vm704, 1, 0
        %v721 = vsel %vm705, 1, 0
        %v722 = vsel %vm706, 1, 0
        %v723 = vcvt.s32.f32 %v707
        %v724 = vcvt.s32.f32 %v708
        %v725 = vcvt.s32.f32 %v709
        %v726 = vcvt.s32.f32 %v710
        %v727 = vcvt.s32.f32 %v711
        %v728 = vcvt.s32.f32 %v712
        %v729 = vcvt.s32.f32 %v713
        %v730 = vcvt.s32.f32 %v714
        %v731 = vcvt.s32.f32 %v715
        %v732 = vcvt.s32.f32 %v716
        %v733 = vcvt.s32.f32 %v717
        %v734 = vcvt.s32.f32 %v718
        %v735 = vcvt.s32.f32 %v719
        %v736 = vcvt.s32.f32 %v720
        %v737 = vcvt.s32.f32 %v721
        %v738 = vcvt.s32.f32 %v722
        %v739 = vadd.f32 %v723, %v275
        %v740 = vadd.f32 %v724, %v276
        %v741 = vadd.f32 %v725, %v277
        %v742 = vadd.f32 %v726, %v278
        %v743 = vadd.f32 %v727, %v279
        %v744 = vadd.f32 %v728, %v280
        %v745 = vadd.f32 %v729, %v281
        %v746 = vadd.f32 %v730, %v282
        %v747 = vadd.f32 %v731, %v283
        %v748 = vadd.f32 %v732, %v284
        %v749 = vadd.f32 %v733, %v285
        %v750 = vadd.f32 %v734, %v286
        %v751 = vadd.f32 %v735, %v287
        %v752 = vadd.f32 %v736, %v288
        %v753 = vadd.f32 %v737, %v289
        %v754 = vadd.f32 %v738, %v290
        %755 = vst [vmem:[%s271] sm:$0xff] %v739
        %756 = vst [vmem:[%s271 + $0x8] sm:$0xff] %v740
        %757 = vst [vmem:[%s271 + $0x10] sm:$0xff] %v741
        %758 = vst [vmem:[%s271 + $0x18] sm:$0xff] %v742
        %759 = vst [vmem:[%s271 + $0x20] sm:$0xff] %v743
        %760 = vst [vmem:[%s271 + $0x28] sm:$0xff] %v744
        %761 = vst [vmem:[%s271 + $0x30] sm:$0xff] %v745
        %762 = vst [vmem:[%s271 + $0x38] sm:$0xff] %v746
        %763 = vst [vmem:[%s271 + $0x40] sm:$0xff] %v747
        %764 = vst [vmem:[%s271 + $0x48] sm:$0xff] %v748
        %765 = vst [vmem:[%s271 + $0x50] sm:$0xff] %v749
        %766 = vst [vmem:[%s271 + $0x58] sm:$0xff] %v750
        %767 = vst [vmem:[%s271 + $0x60] sm:$0xff] %v751
        %768 = vst [vmem:[%s271 + $0x68] sm:$0xff] %v752
        %769 = vst [vmem:[%s271 + $0x70] sm:$0xff] %v753
        %770 = vst [vmem:[%s271 + $0x78] sm:$0xff] %v754
        %s771 = sand.u32 %s141, 1
        %s772 = scalar_lea.sflag [#allocation4], %s771
        %s773 = sand.u32 %s141, 1
        %s774 = smul.addr %s773, 128
        %s775 = scalar_lea.vmem [#allocation8], %s774
        // Predicated region
        $region53: #{spiking_res_block.1} parent=39 // pred_check
          %p776 = pneg %p151
        $region54: #{spiking_res_block.1} parent=39 // pred_check_branch
          %778 = sbr.rel (%p776) target = $region56
        $region55: #{spiking_res_block.1} parent=39 // pred_region
          %s779 = smul.u32 16, %s23
          %s781 = ssub.s32 2048, 2048
          %782 = vsyncadd %s772, %s781
          %s783 = smul.addr %s779, 128
          %s784 = scalar_lea.hbm %s5, %s783
          %s785 = sshll.u32 %s775, 4
          %s786 = int_to_ptr.vmem [resolvable:$true] %s785
          %791 = dma.vmem_to_hbm [thread:$0]  %s786, 2048, %s784, %s772, 128, 128, 8
        $region56: #{spiking_res_block.1} parent=39 // pred_fallthru
          _
      $region40: #{spiking_res_block.1} parent=5 // pred_fallthru
        _
      %p792 = scmp.le.s32.totalorder 2, %s18
      // Predicated region
      $region57: #{spiking_res_block.1} parent=5 // pred_check
        %p793 = pneg %p792
      $region58: #{spiking_res_block.1} parent=5 // pred_check_branch
        %795 = sbr.rel (%p793) target = $region60
      $region59: #{spiking_res_block.1} parent=5 // pred_region
        %s796 = ssub.s32 %s18, 2
        // Predicated region
        $region61: #{spiking_res_block.1} parent=59 // pred_check
          %p797 = pneg %p157
        $region62: #{spiking_res_block.1} parent=59 // pred_check_branch
          %799 = sbr.rel (%p797) target = $region64
        $region63: #{spiking_res_block.1} parent=59 // pred_region
          %s800 = sand.u32 %s142, 1
          %s801 = scalar_lea.sflag [#allocation4], %s800
          %s802 = sand.u32 %s142, 1
          %s803 = smul.addr %s802, 128
          %s804 = scalar_lea.vmem [#allocation8], %s803
          %805 = dma.done %s801, 2048
        $region64: #{spiking_res_block.1} parent=59 // pred_fallthru
          _
      $region60: #{spiking_res_block.1} parent=5 // pred_fallthru
        _
    $region6: #{spiking_res_block.1} parent=1 // loop_footer
      %s22 = sadd.s32 1, %s18
    $region7: #{spiking_res_block.1} parent=1 // loop_footer_branch
      %17 = sbr.rel target = $region3
    $region8: #{spiking_res_block.1} parent=1 // loop_exit
      _
    %806 = vsyncpa [#allocation3], 1
    %s807 = scalar_lea.sflag [#allocation3], 1
    %808 = vsyncpa %s807, 1
    %809 = vsyncpa [#allocation6], 1
    %810 = vsyncpa [#allocation4], 1
    %s811 = scalar_lea.sflag [#allocation4], 1
    %812 = vsyncpa %s811, 1

</llo_original>
